<compile_context>
chip_gen: v7x
topology: tpu7x:2x2x1
jax: 0.10.0
libtpu: 0.0.40
codegen_flags: <defaults>
</compile_context>

<pallas_src>
import functools

import jax
import jax.numpy as jnp
from jax import lax
from jax.experimental import pallas as pl
from jax.experimental.pallas import tpu as pltpu

EPS = 1e-5  # nn.LayerNorm default

_MAX_TILE_ROWS = 1024   # beyond this the HBM-roofline plateau is already hit
_MIN_GRID_STEPS = 4     # never grid=(1,); even step counts help v7x megacore


@functools.lru_cache(maxsize=1)
def _vmem_budgets():
    """(pipeline_budget_bytes, vmem_limit_bytes), gated on the chip's VMEM."""
    vmem_bytes = 128 * 1024 * 1024
    try:
        vmem_bytes = int(pltpu.get_tpu_info().vmem_capacity_bytes)
    except Exception:
        pass  # fall back to the conservative 128 MiB assumption
    if vmem_bytes <= 64 * 1024 * 1024:
        # v7x-class: 64 MiB per TensorCore. Moderate tiles already hit the
        # 3.2 TB/s roofline; keep DMA tiles + f32 temps well under the limit.
        return 20 * 1024 * 1024, 48 * 1024 * 1024
    # v5e / v6e: 128 MiB physical VMEM -> bigger tiles amortize the ~0.35 us
    # per-grid-step overhead for large-D models.
    return 40 * 1024 * 1024, 64 * 1024 * 1024


def _round_up(x, m):
    return -(-x // m) * m


def _choose_tile_rows(rows, d, itemsize, n_streams):
    """Row-tile size: big enough to amortize per-step overhead, small enough
    to (a) fit double-buffered DMA tiles + f32 intermediates in the VMEM
    budget and (b) leave >= _MIN_GRID_STEPS grid steps for pipelining."""
    budget, _ = _vmem_budgets()
    # Sublane alignment per dtype packing (f32: 8, bf16/f16: 16, 8-bit: 32).
    align = {4: 8, 2: 16, 1: 32}.get(itemsize, 8)
    if rows <= align:
        return rows  # single full-extent block; nothing to pipeline

    # Bytes per tiled row: double-buffered DMA tiles for every tiled stream
    # plus the in-kernel f32 working set (~2 full-tile f32 temporaries per
    # stream from the upcast / centered pass / epilogue).
    bytes_per_row = 2 * n_streams * d * itemsize + 2 * n_streams * d * 4
    cap = budget // max(bytes_per_row, 1)
    cap = max(align, (cap // align) * align)   # never below the packing align
    cap = min(cap, _MAX_TILE_ROWS)

    # Enforce a minimum number of grid steps so the pipeline overlaps DMA and
    # compute (and v7x has work to shard across both TensorCores).
    want = max(align, _round_up(pl.cdiv(rows, _MIN_GRID_STEPS), align))
    tile = min(cap, want)

    # Prefer an even step count (v7x: the single "parallel" axis is split
    # across 2 TCs; an odd count leaves a one-tile tail on one core).
    steps = pl.cdiv(rows, tile)
    if steps > 1 and steps % 2 == 1:
        cand = max(align, _round_up(pl.cdiv(rows, steps + 1), align))
        if pl.cdiv(rows, cand) % 2 == 0:
            tile = cand
    return tile


def _ln_rows(v, g, b):
    """Row-wise LayerNorm of a (T, D) tile in f32, two-pass (centered)
    variance for PyTorch-parity numerics. VPU/EUP work is free under the
    saturated DMA slot, so no single-pass shortcut."""
    v = v.astype(jnp.float32)
    mean = jnp.mean(v, axis=-1, keepdims=True)
    centered = v - mean
    var = jnp.mean(centered * centered, axis=-1, keepdims=True)
    inv = lax.rsqrt(var + EPS)
    return centered * inv * g + b


def _layernorm_kernel(x_ref, g_ref, b_ref, o_ref):
    g = g_ref[...].astype(jnp.float32)   # (1, D), resident in VMEM
    b = b_ref[...].astype(jnp.float32)   # (1, D)
    o_ref[...] = _ln_rows(x_ref[...], g, b).astype(o_ref.dtype)


def _layernorm_pair_kernel(x_ref, y_ref, g_ref, b_ref, ox_ref, oy_ref):
    # Fused: normalize one tile of x AND one tile of y per grid step with the
    # shared gamma/beta (saves one launch + one gamma/beta DMA; bytes/step
    # doubles, so tile sizing uses n_streams=4).
    g = g_ref[...].astype(jnp.float32)
    b = b_ref[...].astype(jnp.float32)
    ox_ref[...] = _ln_rows(x_ref[...], g, b).astype(ox_ref.dtype)
    oy_ref[...] = _ln_rows(y_ref[...], g, b).astype(oy_ref.dtype)


def layernorm_pallas(x, gamma, beta):
    """LayerNorm over the last axis of x (any leading dims), via Pallas.

    This is the hot path: in real CrossAttention the two PreNorm inputs
    usually have different sequence lengths, so each is normalized here.
    """
    orig_shape = x.shape
    d = orig_shape[-1]
    rows = x.size // d
    x2 = x.reshape(rows, d)
    g2 = gamma.reshape(1, d)
    b2 = beta.reshape(1, d)

    _, vmem_limit = _vmem_budgets()
    tile_rows = _choose_tile_rows(rows, d, x2.dtype.itemsize, n_streams=2)
    grid = (pl.cdiv(rows, tile_rows),)  # ragged last block handled by Pallas
    row_spec = pl.BlockSpec((tile_rows, d), lambda i: (i, 0))

    # TODO(synk): for D < 128 (lane-sparse loads/stores) a k=128//D row-fold
    # with a segmented reduction would make traffic lane-dense; real Cross-ViT
    # dims are typically >= 128 so this repack is not implemented here.
    out = pl.pallas_call(
        _layernorm_kernel,
        out_shape=jax.ShapeDtypeStruct((rows, d), x.dtype),
        grid_spec=pltpu.PrefetchScalarGridSpec(
            num_scalar_prefetch=0,
            grid=grid,
            in_specs=[
                row_spec,
                pl.BlockSpec(memory_space=pltpu.MemorySpace.VMEM),  # gamma
                pl.BlockSpec(memory_space=pltpu.MemorySpace.VMEM),  # beta
            ],
            out_specs=row_spec,
        ),
        compiler_params=pltpu.CompilerParams(
            dimension_semantics=("parallel",),
            vmem_limit_bytes=vmem_limit,
        ),
    )(x2, g2, b2)
    return out.reshape(orig_shape)


def layernorm_pair_pallas(x, y, gamma, beta):
    """Fused LayerNorm of x and y (shared gamma/beta) in one pallas_call.

    Falls back to two single calls if the flattened row counts / dtypes
    differ (e.g. CrossAttention branches with different sequence lengths).
    No wrapper-side concat is ever done to force fusion — that would be an
    extra HBM pass.
    """
    d = x.shape[-1]
    assert y.shape[-1] == d, "x and y must share the normalized dimension"
    rows_x = x.size // d
    rows_y = y.size // d
    if rows_x != rows_y or x.dtype != y.dtype:
        return (layernorm_pallas(x, gamma, beta),
                layernorm_pallas(y, gamma, beta))

    x2 = x.reshape(rows_x, d)
    y2 = y.reshape(rows_y, d)
    g2 = gamma.reshape(1, d)
    b2 = beta.reshape(1, d)

    _, vmem_limit = _vmem_budgets()
    tile_rows = _choose_tile_rows(rows_x, d, x2.dtype.itemsize, n_streams=4)
    grid = (pl.cdiv(rows_x, tile_rows),)
    row_spec = pl.BlockSpec((tile_rows, d), lambda i: (i, 0))

    ox, oy = pl.pallas_call(
        _layernorm_pair_kernel,
        out_shape=(jax.ShapeDtypeStruct((rows_x, d), x.dtype),
                   jax.ShapeDtypeStruct((rows_y, d), y.dtype)),
        grid_spec=pltpu.PrefetchScalarGridSpec(
            num_scalar_prefetch=0,
            grid=grid,
            in_specs=[
                row_spec,                                            # x tile
                row_spec,                                            # y tile
                pl.BlockSpec(memory_space=pltpu.MemorySpace.VMEM),   # gamma
                pl.BlockSpec(memory_space=pltpu.MemorySpace.VMEM),   # beta
            ],
            out_specs=(row_spec, row_spec),
        ),
        compiler_params=pltpu.CompilerParams(
            dimension_semantics=("parallel",),
            vmem_limit_bytes=vmem_limit,
        ),
    )(x2, y2, g2, b2)
    return ox.reshape(x.shape), oy.reshape(y.shape)


class PreNormPallas:
    """JAX/Pallas equivalent of PreNorm(dim, fn)."""

    def __init__(self, dim, fn):
        # nn.LayerNorm default init: weight = ones, bias = zeros. Kept in f32
        # for parity with nn.LayerNorm regardless of activation dtype.
        self.gamma = jnp.ones((dim,), dtype=jnp.float32)
        self.beta = jnp.zeros((dim,), dtype=jnp.float32)
        self.fn = fn

    def __call__(self, x, y):
        nx, ny = layernorm_pair_pallas(x, y, self.gamma, self.beta)
        return self.fn(nx, ny)


def _layernorm_ref(x, gamma, beta):
    mean = jnp.mean(x, axis=-1, keepdims=True)
    var = jnp.mean((x - mean) ** 2, axis=-1, keepdims=True)
    return (x - mean) / jnp.sqrt(var + EPS) * gamma + beta


if __name__ == "__main__":
    key = jax.random.PRNGKey(0)
    kx, ky, kz = jax.random.split(key, 3)

    B, N, D = 2, 8, 32
    x = jax.random.normal(kx, (B, N, D), dtype=jnp.float32)
    y = jax.random.normal(ky, (B, N, D), dtype=jnp.float32)

    # TODO(synk): `fn` is an arbitrary user-supplied submodule (cross-attention
    # in Cross_ViT); a simple elementwise placeholder is used for the demo.
    fn = lambda a, b: a + b

    module = PreNormPallas(D, fn)

    # Fused pair path (matching shapes).
    out = module(x, y)
    out = jax.block_until_ready(out)
    ref = fn(_layernorm_ref(x, module.gamma, module.beta),
             _layernorm_ref(y, module.gamma, module.beta))
    assert out.shape == (B, N, D)
    assert jnp.allclose(out, ref, atol=1e-5, rtol=1e-5)

    # Fallback path (different sequence lengths -> two single-tensor calls,
    # the real CrossAttention hot path).
    y_long = jax.random.normal(kz, (B, 12, D), dtype=jnp.float32)
    nx, ny = layernorm_pair_pallas(x, y_long, module.gamma, module.beta)
    nx, ny = jax.block_until_ready((nx, ny))
    assert jnp.allclose(nx, _layernorm_ref(x, module.gamma, module.beta),
                        atol=1e-5, rtol=1e-5)
    assert jnp.allclose(ny, _layernorm_ref(y_long, module.gamma, module.beta),
                        atol=1e-5, rtol=1e-5)

    print("KERNEL_OK")
</pallas_src>

<mosaic_0001>
module attributes {stable_mosaic.version = 11 : i64} {
  func.func @_layernorm_pair_kernel(%arg0: i32, %arg1: memref<8x32xf32, #tpu.memory_space<vmem>>, %arg2: memref<8x32xf32, #tpu.memory_space<vmem>>, %arg3: memref<1x32xf32, #tpu.memory_space<vmem>>, %arg4: memref<1x32xf32, #tpu.memory_space<vmem>>, %arg5: memref<8x32xf32, #tpu.memory_space<vmem>>, %arg6: memref<8x32xf32, #tpu.memory_space<vmem>>) attributes {dimension_semantics = [#tpu.dimension_semantics<parallel>], iteration_bounds = array<i64: 2>, scalar_prefetch = 0 : i64, scratch_operands = 0 : i64, tpu.core_type = #tpu.core_type<tc>, window_params = [{transform_indices = @transform_0, window_bounds = array<i64: 8, 32>}, {transform_indices = @transform_1, window_bounds = array<i64: 8, 32>}, {pipeline_mode = #tpu.pipeline_mode<synchronous>, transform_indices = @transform_2, window_bounds = array<i64: 1, 32>}, {pipeline_mode = #tpu.pipeline_mode<synchronous>, transform_indices = @transform_3, window_bounds = array<i64: 1, 32>}, {transform_indices = @transform_4, window_bounds = array<i64: 8, 32>}, {transform_indices = @transform_5, window_bounds = array<i64: 8, 32>}]} {
    %c0 = arith.constant 0 : index
    %c0_0 = arith.constant 0 : index
    %0 = vector.load %arg3[%c0, %c0_0] : memref<1x32xf32, #tpu.memory_space<vmem>>, vector<1x32xf32>
    %c0_1 = arith.constant 0 : index
    %c0_2 = arith.constant 0 : index
    %1 = vector.load %arg4[%c0_1, %c0_2] : memref<1x32xf32, #tpu.memory_space<vmem>>, vector<1x32xf32>
    %c0_3 = arith.constant 0 : index
    %c0_4 = arith.constant 0 : index
    %2 = vector.load %arg1[%c0_3, %c0_4] : memref<8x32xf32, #tpu.memory_space<vmem>>, vector<8x32xf32>
    %cst = arith.constant dense<0.000000e+00> : vector<8xf32>
    %3 = vector.multi_reduction <add>, %2, %cst [1] : vector<8x32xf32> to vector<8xf32>
    %4 = vector.shape_cast %3 : vector<8xf32> to vector<8x1xf32>
    %cst_5 = arith.constant 3.200000e+01 : f32
    %5 = vector.broadcast %cst_5 : f32 to vector<8x1xf32>
    %6 = arith.divf %4, %5 : vector<8x1xf32>
    %7 = vector.broadcast %6 : vector<8x1xf32> to vector<8x32xf32>
    %8 = arith.subf %2, %7 : vector<8x32xf32>
    %9 = arith.mulf %8, %8 : vector<8x32xf32>
    %cst_6 = arith.constant dense<0.000000e+00> : vector<8xf32>
    %10 = vector.multi_reduction <add>, %9, %cst_6 [1] : vector<8x32xf32> to vector<8xf32>
    %11 = vector.shape_cast %10 : vector<8xf32> to vector<8x1xf32>
    %cst_7 = arith.constant 3.200000e+01 : f32
    %12 = vector.broadcast %cst_7 : f32 to vector<8x1xf32>
    %13 = arith.divf %11, %12 : vector<8x1xf32>
    %cst_8 = arith.constant 9.99999974E-6 : f32
    %14 = vector.broadcast %cst_8 : f32 to vector<8x1xf32>
    %15 = arith.addf %13, %14 : vector<8x1xf32>
    %16 = math.rsqrt %15 : vector<8x1xf32>
    %17 = vector.broadcast %16 : vector<8x1xf32> to vector<8x32xf32>
    %18 = arith.mulf %8, %17 : vector<8x32xf32>
    %19 = vector.broadcast %0 : vector<1x32xf32> to vector<8x32xf32>
    %20 = arith.mulf %18, %19 : vector<8x32xf32>
    %21 = vector.broadcast %1 : vector<1x32xf32> to vector<8x32xf32>
    %22 = arith.addf %20, %21 : vector<8x32xf32>
    %c0_9 = arith.constant 0 : index
    %c0_10 = arith.constant 0 : index
    %23 = vector.load %arg5[%c0_9, %c0_10] : memref<8x32xf32, #tpu.memory_space<vmem>>, vector<8x32xf32>
    tpu.vector_store %arg5[%c0_9, %c0_10], %22 {strides = array<i32>} : memref<8x32xf32, #tpu.memory_space<vmem>>, vector<8x32xf32>,
    %c0_11 = arith.constant 0 : index
    %c0_12 = arith.constant 0 : index
    %24 = vector.load %arg2[%c0_11, %c0_12] : memref<8x32xf32, #tpu.memory_space<vmem>>, vector<8x32xf32>
    %cst_13 = arith.constant dense<0.000000e+00> : vector<8xf32>
    %25 = vector.multi_reduction <add>, %24, %cst_13 [1] : vector<8x32xf32> to vector<8xf32>
    %26 = vector.shape_cast %25 : vector<8xf32> to vector<8x1xf32>
    %cst_14 = arith.constant 3.200000e+01 : f32
    %27 = vector.broadcast %cst_14 : f32 to vector<8x1xf32>
    %28 = arith.divf %26, %27 : vector<8x1xf32>
    %29 = vector.broadcast %28 : vector<8x1xf32> to vector<8x32xf32>
    %30 = arith.subf %24, %29 : vector<8x32xf32>
    %31 = arith.mulf %30, %30 : vector<8x32xf32>
    %cst_15 = arith.constant dense<0.000000e+00> : vector<8xf32>
    %32 = vector.multi_reduction <add>, %31, %cst_15 [1] : vector<8x32xf32> to vector<8xf32>
    %33 = vector.shape_cast %32 : vector<8xf32> to vector<8x1xf32>
    %cst_16 = arith.constant 3.200000e+01 : f32
    %34 = vector.broadcast %cst_16 : f32 to vector<8x1xf32>
    %35 = arith.divf %33, %34 : vector<8x1xf32>
    %cst_17 = arith.constant 9.99999974E-6 : f32
    %36 = vector.broadcast %cst_17 : f32 to vector<8x1xf32>
    %37 = arith.addf %35, %36 : vector<8x1xf32>
    %38 = math.rsqrt %37 : vector<8x1xf32>
    %39 = vector.broadcast %38 : vector<8x1xf32> to vector<8x32xf32>
    %40 = arith.mulf %30, %39 : vector<8x32xf32>
    %41 = vector.broadcast %0 : vector<1x32xf32> to vector<8x32xf32>
    %42 = arith.mulf %40, %41 : vector<8x32xf32>
    %43 = vector.broadcast %1 : vector<1x32xf32> to vector<8x32xf32>
    %44 = arith.addf %42, %43 : vector<8x32xf32>
    %c0_18 = arith.constant 0 : index
    %c0_19 = arith.constant 0 : index
    %45 = vector.load %arg6[%c0_18, %c0_19] : memref<8x32xf32, #tpu.memory_space<vmem>>, vector<8x32xf32>
    tpu.vector_store %arg6[%c0_18, %c0_19], %44 {strides = array<i32>} : memref<8x32xf32, #tpu.memory_space<vmem>>, vector<8x32xf32>,
    return
  }
  func.func @transform_0(%arg0: i32) -> (i32, i32) {
    %c0_i32 = arith.constant 0 : i32
    %c0_i32_0 = arith.constant 0 : i32
    return %arg0, %c0_i32 : i32, i32
  }
  func.func @transform_1(%arg0: i32) -> (i32, i32) {
    %c0_i32 = arith.constant 0 : i32
    %c0_i32_0 = arith.constant 0 : i32
    return %arg0, %c0_i32 : i32, i32
  }
  func.func @transform_2(%arg0: i32) -> (i32, i32) {
    %c0_i32 = arith.constant 0 : i32
    %c0_i32_0 = arith.constant 0 : i32
    %c0_i32_1 = arith.constant 0 : i32
    return %c0_i32, %c0_i32_0 : i32, i32
  }
  func.func @transform_3(%arg0: i32) -> (i32, i32) {
    %c0_i32 = arith.constant 0 : i32
    %c0_i32_0 = arith.constant 0 : i32
    %c0_i32_1 = arith.constant 0 : i32
    return %c0_i32, %c0_i32_0 : i32, i32
  }
  func.func @transform_4(%arg0: i32) -> (i32, i32) {
    %c0_i32 = arith.constant 0 : i32
    %c0_i32_0 = arith.constant 0 : i32
    return %arg0, %c0_i32 : i32, i32
  }
  func.func @transform_5(%arg0: i32) -> (i32, i32) {
    %c0_i32 = arith.constant 0 : i32
    %c0_i32_0 = arith.constant 0 : i32
    return %arg0, %c0_i32 : i32, i32
  }
}

</mosaic_0001>

<llo_original>
// kernel: tpu_custom_call.1
$region0: #{tpu_custom_call.1}
  #allocation0 [shape = 'u32[]', space=smem, size = 0x4, offset = 0x4, fixed_abs, tag = 'smem constant byte address 0x4 - core index']
  #allocation1 [shape = 'u32[144,128]{1,0:T(1,128)}', space=vmem, size = 0x12000, scoped, tag = 'internal scratch']
  %s0 = inlined_call_operand.hbm [shape: f32[16,32], index: 0, kind: input, shape index: {}]
  %s1 = inlined_call_operand.hbm [shape: f32[16,32], index: 1, kind: input, shape index: {}]
  %s2 = inlined_call_operand.hbm [shape: f32[1,32], index: 2, kind: input, shape index: {}]
  %s3 = inlined_call_operand.hbm [shape: f32[1,32], index: 3, kind: input, shape index: {}]
  %s4 = inlined_call_operand.hbm [shape: f32[16,32], index: 4, kind: output, shape index: {0}]
  %s5 = inlined_call_operand.hbm [shape: f32[16,32], index: 5, kind: output, shape index: {1}]
  %6 = xla_tuple %s4, %s5
  %s7 = sld [smem:[#allocation0]]
  $region73: #{tpu_custom_call.1} parent=0
    _
  %s9 = ssub.s32 1, %s7
  %s10 = scalar_select 0, %s9, %s7
  $region1: #{tpu_custom_call.1} parent=0
    #allocation2 [shape = 'u8[8192]{0}', space=vmem, size = 0x2000, scoped, tag = 'input window, operand 0']
    #allocation3 [shape = 's32[2]{0}', space=sflag, size = 0x8, scoped, tag = 'scoped memory for tpu_custom_call.1']
    #allocation4 [shape = 's32[2]{0}', space=sflag, size = 0x8, scoped, tag = 'scoped memory for tpu_custom_call.1']
    #allocation5 [shape = 'u8[8192]{0}', space=vmem, size = 0x2000, scoped, tag = 'input window, operand 1']
    #allocation6 [shape = 's32[2]{0}', space=sflag, size = 0x8, scoped, tag = 'scoped memory for tpu_custom_call.1']
    #allocation7 [shape = 'u8[512]{0}', space=vmem, size = 0x400, scoped, tag = 'input window, operand 2, single buffered']
    #allocation8 [shape = 'u8[512]{0}', space=vmem, size = 0x400, scoped, tag = 'input window, operand 3, single buffered']
    #allocation9 [shape = 's32[1]{0}', space=sflag, size = 0x4, scoped, tag = 'scoped memory for tpu_custom_call.1']
    #allocation10 [shape = 'u8[8192]{0}', space=vmem, size = 0x2000, scoped, tag = 'output window, operand 0']
    #allocation11 [shape = 'u8[8192]{0}', space=vmem, size = 0x2000, scoped, tag = 'output window, operand 1']
    #allocation12 [shape = 's32[2]{0}', space=sflag, size = 0x8, scoped, tag = 'scoped memory for tpu_custom_call.1']
    %11 = vsyncpa [#allocation3], 0
    %s12 = scalar_lea.sflag [#allocation3], 1
    %13 = vsyncpa %s12, 0
    %14 = vsyncpa [#allocation6], 0
    %s15 = scalar_lea.sflag [#allocation6], 1
    %16 = vsyncpa %s15, 0
    %17 = vsyncpa [#allocation9], 0
    %18 = vsyncpa [#allocation4], 0
    %s19 = scalar_lea.sflag [#allocation4], 1
    %20 = vsyncpa %s19, 0
    %21 = vsyncpa [#allocation12], 0
    %s22 = scalar_lea.sflag [#allocation12], 1
    %23 = vsyncpa %s22, 0
    loop: start=0, step=1, limit=4
    $region2: #{tpu_custom_call.1} parent=1 // loop_pre_header
      _
    $region3: #{tpu_custom_call.1} parent=1 // loop_header
      %s25 = sphi 0, %s29
      %p26 = scmp.ge.s32.totalorder %s25, 4
      %s35 = sphi 0, %s37
      %s38 = sphi 0, %s35
      %s39 = sphi 0, %s38
      %s55 = sphi 0, %s39
      %s61 = sphi 0, %s63
      %s64 = sphi 0, %s61
      %s65 = sphi 0, %s64
      %s81 = sphi 0, %s65
      %s85 = sphi 0, %s85
      %s87 = sphi 0, %s85
      %s88 = sphi 0, %s87
      %s102 = sphi 0, %s88
      %s106 = sphi 0, %s106
      %s108 = sphi 0, %s106
      %s109 = sphi 0, %s108
      %s123 = sphi 0, %s109
      %s129 = sphi 0, %s131
      %s132 = sphi 0, %s129
      %s133 = sphi 0, %s132
      %s149 = sphi 0, %s133
      %s155 = sphi 0, %s157
      %s158 = sphi 0, %s155
      %s159 = sphi 0, %s158
      %s175 = sphi 0, %s159
    $region4: #{tpu_custom_call.1} parent=1 // loop_header_branch
      %28 = sbr.rel (%p26) target = $region8
    $region5: #{tpu_custom_call.1} parent=1 // loop_body
      %s30 = ssub.s32 %s25, 1
      %s31 = ssub.s32 %s25, 2
      %s32 = sadd.s32 %s25, 1
      %s33 = ssub.s32 %s25, %s32
      %p34 = scmp.eq.s32.totalorder %s33, 0
      %s36 = sadd.s32 %s35, 1
      %s37 = scalar_select %p34, %s35, %s36
      %p40 = pneg %p34
      %p41 = scmp.eq.s32.totalorder %s25, 1
      %p42 = por %p40, %p41
      %p43 = scmp.ne.s32.totalorder %s35, %s38
      %p44 = scmp.eq.s32.totalorder %s25, 0
      %p45 = por %p43, %p44
      %p46 = scmp.ne.s32.totalorder %s35, %s38
      %p47 = scmp.eq.s32.totalorder %s30, 1
      %p48 = por %p46, %p47
      %p49 = scmp.ne.s32.totalorder %s38, %s39
      %p50 = scmp.eq.s32.totalorder %s30, 0
      %p51 = por %p49, %p50
      %p52 = scmp.ne.s32.totalorder %s38, %s39
      %p53 = scmp.eq.s32.totalorder %s31, 1
      %p54 = por %p52, %p53
      %p56 = scmp.ne.s32.totalorder %s39, %s55
      %p57 = scmp.eq.s32.totalorder %s31, 0
      %p58 = por %p56, %p57
      %s59 = ssub.s32 %s25, %s32
      %p60 = scmp.eq.s32.totalorder %s59, 0
      %s62 = sadd.s32 %s61, 1
      %s63 = scalar_select %p60, %s61, %s62
      %p66 = pneg %p60
      %p67 = scmp.eq.s32.totalorder %s25, 1
      %p68 = por %p66, %p67
      %p69 = scmp.ne.s32.totalorder %s61, %s64
      %p70 = scmp.eq.s32.totalorder %s25, 0
      %p71 = por %p69, %p70
      %p72 = scmp.ne.s32.totalorder %s61, %s64
      %p73 = scmp.eq.s32.totalorder %s30, 1
      %p74 = por %p72, %p73
      %p75 = scmp.ne.s32.totalorder %s64, %s65
      %p76 = scmp.eq.s32.totalorder %s30, 0
      %p77 = por %p75, %p76
      %p78 = scmp.ne.s32.totalorder %s64, %s65
      %p79 = scmp.eq.s32.totalorder %s31, 1
      %p80 = por %p78, %p79
      %p82 = scmp.ne.s32.totalorder %s65, %s81
      %p83 = scmp.eq.s32.totalorder %s31, 0
      %p84 = por %p82, %p83
      %s86 = sadd.s32 %s85, 1
      %p89 = scmp.eq.s32.totalorder %s25, 1
      %p90 = scmp.ne.s32.totalorder %s85, %s87
      %p91 = scmp.eq.s32.totalorder %s25, 0
      %p92 = por %p90, %p91
      %p93 = scmp.ne.s32.totalorder %s85, %s87
      %p94 = scmp.eq.s32.totalorder %s30, 1
      %p95 = por %p93, %p94
      %p96 = scmp.ne.s32.totalorder %s87, %s88
      %p97 = scmp.eq.s32.totalorder %s30, 0
      %p98 = por %p96, %p97
      %p99 = scmp.ne.s32.totalorder %s87, %s88
      %p100 = scmp.eq.s32.totalorder %s31, 1
      %p101 = por %p99, %p100
      %p103 = scmp.ne.s32.totalorder %s88, %s102
      %p104 = scmp.eq.s32.totalorder %s31, 0
      %p105 = por %p103, %p104
      %s107 = sadd.s32 %s106, 1
      %p110 = scmp.eq.s32.totalorder %s25, 1
      %p111 = scmp.ne.s32.totalorder %s106, %s108
      %p112 = scmp.eq.s32.totalorder %s25, 0
      %p113 = por %p111, %p112
      %p114 = scmp.ne.s32.totalorder %s106, %s108
      %p115 = scmp.eq.s32.totalorder %s30, 1
      %p116 = por %p114, %p115
      %p117 = scmp.ne.s32.totalorder %s108, %s109
      %p118 = scmp.eq.s32.totalorder %s30, 0
      %p119 = por %p117, %p118
      %p120 = scmp.ne.s32.totalorder %s108, %s109
      %p121 = scmp.eq.s32.totalorder %s31, 1
      %p122 = por %p120, %p121
      %p124 = scmp.ne.s32.totalorder %s109, %s123
      %p125 = scmp.eq.s32.totalorder %s31, 0
      %p126 = por %p124, %p125
      %s127 = ssub.s32 %s25, %s32
      %p128 = scmp.eq.s32.totalorder %s127, 0
      %s130 = sadd.s32 %s129, 1
      %s131 = scalar_select %p128, %s129, %s130
      %p134 = pneg %p128
      %p135 = scmp.eq.s32.totalorder %s25, 1
      %p136 = por %p134, %p135
      %p137 = scmp.ne.s32.totalorder %s129, %s132
      %p138 = scmp.eq.s32.totalorder %s25, 0
      %p139 = por %p137, %p138
      %p140 = scmp.ne.s32.totalorder %s129, %s132
      %p141 = scmp.eq.s32.totalorder %s30, 1
      %p142 = por %p140, %p141
      %p143 = scmp.ne.s32.totalorder %s132, %s133
      %p144 = scmp.eq.s32.totalorder %s30, 0
      %p145 = por %p143, %p144
      %p146 = scmp.ne.s32.totalorder %s132, %s133
      %p147 = scmp.eq.s32.totalorder %s31, 1
      %p148 = por %p146, %p147
      %p150 = scmp.ne.s32.totalorder %s133, %s149
      %p151 = scmp.eq.s32.totalorder %s31, 0
      %p152 = por %p150, %p151
      %s153 = ssub.s32 %s25, %s32
      %p154 = scmp.eq.s32.totalorder %s153, 0
      %s156 = sadd.s32 %s155, 1
      %s157 = scalar_select %p154, %s155, %s156
      %p160 = pneg %p154
      %p161 = scmp.eq.s32.totalorder %s25, 1
      %p162 = por %p160, %p161
      %p163 = scmp.ne.s32.totalorder %s155, %s158
      %p164 = scmp.eq.s32.totalorder %s25, 0
      %p165 = por %p163, %p164
      %p166 = scmp.ne.s32.totalorder %s155, %s158
      %p167 = scmp.eq.s32.totalorder %s30, 1
      %p168 = por %p166, %p167
      %p169 = scmp.ne.s32.totalorder %s158, %s159
      %p170 = scmp.eq.s32.totalorder %s30, 0
      %p171 = por %p169, %p170
      %p172 = scmp.ne.s32.totalorder %s158, %s159
      %p173 = scmp.eq.s32.totalorder %s31, 1
      %p174 = por %p172, %p173
      %p176 = scmp.ne.s32.totalorder %s159, %s175
      %p177 = scmp.eq.s32.totalorder %s31, 0
      %p178 = por %p176, %p177
      %p179 = scmp.le.s32.totalorder 1, %s25
      %p180 = scmp.lt.s32.totalorder %s25, 3
      %p181 = pnand %p179, %p180
      %p182 = pneg %p181
      // Predicated region
      $region9: #{tpu_custom_call.1} parent=5 // pred_check
        _
      $region10: #{tpu_custom_call.1} parent=5 // pred_check_branch
        %184 = sbr.rel (%p181) target = $region12
      $region11: #{tpu_custom_call.1} parent=5 // pred_region
        %s185 = ssub.s32 %s25, 1
        // Predicated region
        $region13: #{tpu_custom_call.1} parent=11 // pred_check
          %p186 = pneg %p98
        $region14: #{tpu_custom_call.1} parent=11 // pred_check_branch
          %188 = sbr.rel (%p186) target = $region16
        $region15: #{tpu_custom_call.1} parent=11 // pred_region
          %s190 = ssub.s32 16, 16
          %191 = vsyncadd [#allocation6], %s190
          %s193 = sshll.u32 [#allocation7], 4
          %s194 = int_to_ptr.vmem [resolvable:$true] %s193
          %196 = dma.hbm_to_vmem [thread:$0]  %s2, 16, %s194, [#allocation6]
        $region16: #{tpu_custom_call.1} parent=11 // pred_fallthru
          _
        // Predicated region
        $region17: #{tpu_custom_call.1} parent=11 // pred_check
          %p197 = pneg %p119
        $region18: #{tpu_custom_call.1} parent=11 // pred_check_branch
          %199 = sbr.rel (%p197) target = $region20
        $region19: #{tpu_custom_call.1} parent=11 // pred_region
          %s201 = ssub.s32 16, 16
          %202 = vsyncadd [#allocation9], %s201
          %s204 = sshll.u32 [#allocation8], 4
          %s205 = int_to_ptr.vmem [resolvable:$true] %s204
          %207 = dma.hbm_to_vmem [thread:$0]  %s3, 16, %s205, [#allocation9]
        $region20: #{tpu_custom_call.1} parent=11 // pred_fallthru
          _
      $region12: #{tpu_custom_call.1} parent=5 // pred_fallthru
        _
      %p208 = scmp.lt.s32.totalorder %s25, 2
      // Predicated region
      $region21: #{tpu_custom_call.1} parent=5 // pred_check
        %p209 = pneg %p208
      $region22: #{tpu_custom_call.1} parent=5 // pred_check_branch
        %211 = sbr.rel (%p209) target = $region24
      $region23: #{tpu_custom_call.1} parent=5 // pred_region
        // Predicated region
        $region25: #{tpu_custom_call.1} parent=23 // pred_check
          %p212 = pneg %p45
        $region26: #{tpu_custom_call.1} parent=23 // pred_check_branch
          %214 = sbr.rel (%p212) target = $region28
        $region27: #{tpu_custom_call.1} parent=23 // pred_region
          %s215 = sand.u32 %s35, 1
          %s216 = scalar_lea.sflag [#allocation3], %s215
          %s217 = sand.u32 %s35, 1
          %s218 = smul.addr %s217, 8
          %s219 = scalar_lea.vmem [#allocation2], %s218
          %s221 = ssub.s32 128, 128
          %222 = vsyncadd %s216, %s221
          %s223 = smul.addr %s25, 128
          %s224 = scalar_lea.hbm %s0, %s223
          %s226 = sshll.u32 %s219, 4
          %s227 = int_to_ptr.vmem [resolvable:$true] %s226
          %229 = dma.hbm_to_vmem [thread:$0]  %s224, 128, %s227, %s216
        $region28: #{tpu_custom_call.1} parent=23 // pred_fallthru
          _
        // Predicated region
        $region29: #{tpu_custom_call.1} parent=23 // pred_check
          %p230 = pneg %p71
        $region30: #{tpu_custom_call.1} parent=23 // pred_check_branch
          %232 = sbr.rel (%p230) target = $region32
        $region31: #{tpu_custom_call.1} parent=23 // pred_region
          %s233 = sand.u32 %s25, 1
          %s234 = scalar_lea.sflag [#allocation6], %s233
          %s235 = sand.u32 %s61, 1
          %s236 = smul.addr %s235, 8
          %s237 = scalar_lea.vmem [#allocation5], %s236
          %s239 = ssub.s32 128, 128
          %240 = vsyncadd %s234, %s239
          %s241 = smul.addr %s25, 128
          %s242 = scalar_lea.hbm %s1, %s241
          %s244 = sshll.u32 %s237, 4
          %s245 = int_to_ptr.vmem [resolvable:$true] %s244
          %247 = dma.hbm_to_vmem [thread:$0]  %s242, 128, %s245, %s234
        $region32: #{tpu_custom_call.1} parent=23 // pred_fallthru
          _
      $region24: #{tpu_custom_call.1} parent=5 // pred_fallthru
        _
      %p248 = scmp.le.s32.totalorder 1, %s25
      %p249 = scmp.lt.s32.totalorder %s25, 3
      %p250 = pnand %p248, %p249
      %p251 = pneg %p250
      // Predicated region
      $region33: #{tpu_custom_call.1} parent=5 // pred_check
        _
      $region34: #{tpu_custom_call.1} parent=5 // pred_check_branch
        %253 = sbr.rel (%p250) target = $region36
      $region35: #{tpu_custom_call.1} parent=5 // pred_region
        %s254 = ssub.s32 %s25, 1
        %s255 = sand.u32 %s38, 1
        %s256 = scalar_lea.sflag [#allocation3], %s255
        %s257 = sand.u32 %s38, 1
        %s258 = smul.addr %s257, 8
        %s259 = scalar_lea.vmem [#allocation2], %s258
        // Predicated region
        $region37: #{tpu_custom_call.1} parent=35 // pred_check
          %p260 = pneg %p51
        $region38: #{tpu_custom_call.1} parent=35 // pred_check_branch
          %262 = sbr.rel (%p260) target = $region40
        $region39: #{tpu_custom_call.1} parent=35 // pred_region
          %263 = dma.done %s256, 128
        $region40: #{tpu_custom_call.1} parent=35 // pred_fallthru
          _
        %s264 = sand.u32 %s30, 1
        %s265 = scalar_lea.sflag [#allocation6], %s264
        %s266 = sand.u32 %s64, 1
        %s267 = smul.addr %s266, 8
        %s268 = scalar_lea.vmem [#allocation5], %s267
        // Predicated region
        $region41: #{tpu_custom_call.1} parent=35 // pred_check
          %p269 = pneg %p77
        $region42: #{tpu_custom_call.1} parent=35 // pred_check_branch
          %271 = sbr.rel (%p269) target = $region44
        $region43: #{tpu_custom_call.1} parent=35 // pred_region
          %272 = dma.done %s265, 128
        $region44: #{tpu_custom_call.1} parent=35 // pred_fallthru
          _
        // Predicated region
        $region45: #{tpu_custom_call.1} parent=35 // pred_check
          %p273 = pneg %p98
        $region46: #{tpu_custom_call.1} parent=35 // pred_check_branch
          %275 = sbr.rel (%p273) target = $region48
        $region47: #{tpu_custom_call.1} parent=35 // pred_region
          %276 = dma.done [#allocation6], 16
        $region48: #{tpu_custom_call.1} parent=35 // pred_fallthru
          _
        // Predicated region
        $region49: #{tpu_custom_call.1} parent=35 // pred_check
          %p277 = pneg %p119
        $region50: #{tpu_custom_call.1} parent=35 // pred_check_branch
          %279 = sbr.rel (%p277) target = $region52
        $region51: #{tpu_custom_call.1} parent=35 // pred_region
          %280 = dma.done [#allocation9], 16
        $region52: #{tpu_custom_call.1} parent=35 // pred_fallthru
          _
        %s281 = sand.u32 %s38, 1
        %s282 = scalar_lea.sflag [#allocation3], %s281
        %s283 = sand.u32 %s38, 1
        %s284 = smul.addr %s283, 8
        %s285 = scalar_lea.vmem [#allocation2], %s284
        %p286 = pneg %p51
        %p287 = pneg %p48
        %s288 = sand.u32 %s30, 1
        %s289 = scalar_lea.sflag [#allocation6], %s288
        %s290 = sand.u32 %s64, 1
        %s291 = smul.addr %s290, 8
        %s292 = scalar_lea.vmem [#allocation5], %s291
        %p293 = pneg %p77
        %p294 = pneg %p74
        %p295 = pneg %p98
        %p296 = pneg %p95
        %p297 = pneg %p119
        %p298 = pneg %p116
        %p299 = pneg %p145
        %p300 = pneg %p142
        %s301 = sand.u32 %s132, 1
        %s302 = scalar_lea.sflag [#allocation4], %s301
        %s303 = sand.u32 %s132, 1
        %s304 = smul.addr %s303, 8
        %s305 = scalar_lea.vmem [#allocation10], %s304
        %p306 = pneg %p171
        %p307 = pneg %p168
        %s308 = sand.u32 %s158, 1
        %s309 = scalar_lea.sflag [#allocation12], %s308
        %s310 = sand.u32 %s158, 1
        %s311 = smul.addr %s310, 8
        %s312 = scalar_lea.vmem [#allocation11], %s311
        %v313 = vld [vmem:[#allocation7] sm:$0x1]
        %v314 = vld [vmem:[#allocation8] sm:$0x1]
        %v315 = vld [vmem:[%s259] sm:$0xff]
        %vm316 = vcmask 261120
        %v317 = vsel %vm316, %v315, 0.0
        %318 = vadd.xlane.f32.xlu0 %v317
        %v319 = vpop.xlane.xlu0 %318
        %v320 = vrcp.pop 32.0
        %v321 = vmul.f32 %v319, %v320
        %v322 = vsub.f32 %v315, %v321
        %v323 = vmul.f32 %v322, %v322
        %v324 = vsel %vm316, %v323, 0.0
        %325 = vadd.xlane.f32.xlu0 %v324
        %v326 = vpop.xlane.xlu0 %325
        %v327 = vmul.f32 %v326, %v320
        %v328 = vadd.f32 %v327, 1e-05
        %v329 = vrsqrt.pop %v328
        %v330 = vmul.f32 %v322, %v329
        %v332 = vlaneseq
        %v333 = vshrl.u32 %v332, 7
        %v334 = vsub.s32 0, %v333
        %v335 = vrot.slane %v313, %v334
        %v337 = vmul.f32 %v330, %v335
        %v339 = vlaneseq
        %v340 = vshrl.u32 %v339, 7
        %v341 = vsub.s32 0, %v340
        %v342 = vrot.slane %v314, %v341
        %v344 = vadd.f32 %v337, %v342
        %345 = vst.msk [vmem:[%s305] sm:$0xff] %vm316, %v344
        %v346 = vld [vmem:[%s268] sm:$0xff]
        %v347 = vsel %vm316, %v346, 0.0
        %348 = vadd.xlane.f32.xlu0 %v347
        %v349 = vpop.xlane.xlu0 %348
        %v350 = vmul.f32 %v349, %v320
        %v351 = vsub.f32 %v346, %v350
        %v352 = vmul.f32 %v351, %v351
        %v353 = vsel %vm316, %v352, 0.0
        %354 = vadd.xlane.f32.xlu0 %v353
        %v355 = vpop.xlane.xlu0 %354
        %v356 = vmul.f32 %v355, %v320
        %v357 = vadd.f32 %v356, 1e-05
        %v358 = vrsqrt.pop %v357
        %v359 = vmul.f32 %v351, %v358
        %v360 = vmul.f32 %v359, %v335
        %v361 = vadd.f32 %v360, %v342
        %362 = vst.msk [vmem:[%s312] sm:$0xff] %vm316, %v361
        %s363 = sand.u32 %s132, 1
        %s364 = scalar_lea.sflag [#allocation4], %s363
        %s365 = sand.u32 %s132, 1
        %s366 = smul.addr %s365, 8
        %s367 = scalar_lea.vmem [#allocation10], %s366
        %s368 = sand.u32 %s158, 1
        %s369 = scalar_lea.sflag [#allocation12], %s368
        %s370 = sand.u32 %s158, 1
        %s371 = smul.addr %s370, 8
        %s372 = scalar_lea.vmem [#allocation11], %s371
        // Predicated region
        $region53: #{tpu_custom_call.1} parent=35 // pred_check
          %p373 = pneg %p142
        $region54: #{tpu_custom_call.1} parent=35 // pred_check_branch
          %375 = sbr.rel (%p373) target = $region56
        $region55: #{tpu_custom_call.1} parent=35 // pred_region
          %s377 = ssub.s32 128, 128
          %378 = vsyncadd %s364, %s377
          %s379 = smul.addr %s30, 128
          %s380 = scalar_lea.hbm %s4, %s379
          %s382 = sshll.u32 %s367, 4
          %s383 = int_to_ptr.vmem [resolvable:$true] %s382
          %385 = dma.vmem_to_hbm [thread:$0]  %s383, 128, %s380, %s364
        $region56: #{tpu_custom_call.1} parent=35 // pred_fallthru
          _
        // Predicated region
        $region57: #{tpu_custom_call.1} parent=35 // pred_check
          %p386 = pneg %p168
        $region58: #{tpu_custom_call.1} parent=35 // pred_check_branch
          %388 = sbr.rel (%p386) target = $region60
        $region59: #{tpu_custom_call.1} parent=35 // pred_region
          %s390 = ssub.s32 128, 128
          %391 = vsyncadd %s369, %s390
          %s392 = smul.addr %s30, 128
          %s393 = scalar_lea.hbm %s5, %s392
          %s395 = sshll.u32 %s372, 4
          %s396 = int_to_ptr.vmem [resolvable:$true] %s395
          %398 = dma.vmem_to_hbm [thread:$0]  %s396, 128, %s393, %s369
        $region60: #{tpu_custom_call.1} parent=35 // pred_fallthru
          _
      $region36: #{tpu_custom_call.1} parent=5 // pred_fallthru
        _
      %p399 = scmp.le.s32.totalorder 2, %s25
      // Predicated region
      $region61: #{tpu_custom_call.1} parent=5 // pred_check
        %p400 = pneg %p399
      $region62: #{tpu_custom_call.1} parent=5 // pred_check_branch
        %402 = sbr.rel (%p400) target = $region64
      $region63: #{tpu_custom_call.1} parent=5 // pred_region
        %s403 = ssub.s32 %s25, 2
        // Predicated region
        $region65: #{tpu_custom_call.1} parent=63 // pred_check
          %p404 = pneg %p148
        $region66: #{tpu_custom_call.1} parent=63 // pred_check_branch
          %406 = sbr.rel (%p404) target = $region68
        $region67: #{tpu_custom_call.1} parent=63 // pred_region
          %s407 = sand.u32 %s133, 1
          %s408 = scalar_lea.sflag [#allocation4], %s407
          %s409 = sand.u32 %s133, 1
          %s410 = smul.addr %s409, 8
          %s411 = scalar_lea.vmem [#allocation10], %s410
          %412 = dma.done %s408, 128
        $region68: #{tpu_custom_call.1} parent=63 // pred_fallthru
          _
        // Predicated region
        $region69: #{tpu_custom_call.1} parent=63 // pred_check
          %p413 = pneg %p174
        $region70: #{tpu_custom_call.1} parent=63 // pred_check_branch
          %415 = sbr.rel (%p413) target = $region72
        $region71: #{tpu_custom_call.1} parent=63 // pred_region
          %s416 = sand.u32 %s159, 1
          %s417 = scalar_lea.sflag [#allocation12], %s416
          %s418 = sand.u32 %s159, 1
          %s419 = smul.addr %s418, 8
          %s420 = scalar_lea.vmem [#allocation11], %s419
          %421 = dma.done %s417, 128
        $region72: #{tpu_custom_call.1} parent=63 // pred_fallthru
          _
      $region64: #{tpu_custom_call.1} parent=5 // pred_fallthru
        _
    $region6: #{tpu_custom_call.1} parent=1 // loop_footer
      %s29 = sadd.s32 1, %s25
    $region7: #{tpu_custom_call.1} parent=1 // loop_footer_branch
      %24 = sbr.rel target = $region3
    $region8: #{tpu_custom_call.1} parent=1 // loop_exit
      _
    %422 = vsyncpa [#allocation3], 1
    %s423 = scalar_lea.sflag [#allocation3], 1
    %424 = vsyncpa %s423, 1
    %425 = vsyncpa [#allocation6], 1
    %s426 = scalar_lea.sflag [#allocation6], 1
    %427 = vsyncpa %s426, 1
    %428 = vsyncpa [#allocation9], 1
    %429 = vsyncpa [#allocation4], 1
    %s430 = scalar_lea.sflag [#allocation4], 1
    %431 = vsyncpa %s430, 1
    %432 = vsyncpa [#allocation12], 1
    %s433 = scalar_lea.sflag [#allocation12], 1
    %434 = vsyncpa %s433, 1

</llo_original>
